<compile_context>
chip_gen: v5e
topology: v5e:2x2
jax: 0.10.0
libtpu: 0.0.40
codegen_flags: <defaults>
</compile_context>

<pallas_src>
import functools

import jax
import jax.numpy as jnp
from jax.experimental import pallas as pl
from jax.experimental.pallas import tpu as pltpu


def _round_up(x, m):
    return (x + m - 1) // m * m


def _wenc_kernel(x_ref, w1_ref, b1_ref, w2_ref, b2_ref, out_ref):
    """One batch tile: out = sigmoid(x @ W1 + b1) @ W2 + b2."""
    # Cast activations to the weights' compute dtype right before the MXU;
    # the x DMA itself stays in whatever dtype the caller handed us.
    x = x_ref[...].astype(w1_ref.dtype)
    h = jnp.dot(x, w1_ref[...], preferred_element_type=jnp.float32)
    # Bias add + sigmoid in f32 (EUP exp/recip; v5e has no bf16 VPU/EUP path).
    h = jax.nn.sigmoid(h + b1_ref[...])
    out = jnp.dot(h.astype(w2_ref.dtype), w2_ref[...],
                  preferred_element_type=jnp.float32)
    # Unpadded n_classes-wide store (masked vst; cheap, hidden under DMA).
    out_ref[...] = (out + b2_ref[...]).astype(out_ref.dtype)


def prepare_params(w1, b1, w2, b2, *, compute_dtype=jnp.bfloat16):
    """Pad/cast weights ONCE, outside the per-call path.

    w1: [inputs_size, n_features] (transpose of torch Linear.weight)
    b1: [n_features]
    w2: [n_features, n_classes]
    b2: [n_classes]
    Hidden width is padded to a multiple of 128 lanes; the padded W1 columns
    produce sigmoid(0)=0.5 hidden units which the zero-padded W2 rows kill.
    The class width is NOT padded (output stays n_classes wide in HBM).
    """
    inputs_size, n_features = w1.shape
    n_classes = w2.shape[1]
    nf_p = _round_up(n_features, 128)

    w1_p = jnp.zeros((inputs_size, nf_p), compute_dtype)
    w1_p = w1_p.at[:, :n_features].set(w1.astype(compute_dtype))
    b1_p = jnp.zeros((1, nf_p), jnp.float32)
    b1_p = b1_p.at[0, :n_features].set(b1.astype(jnp.float32))
    w2_p = jnp.zeros((nf_p, n_classes), compute_dtype)
    w2_p = w2_p.at[:n_features, :].set(w2.astype(compute_dtype))
    b2_p = b2.astype(jnp.float32).reshape(1, n_classes)
    return w1_p, b1_p, w2_p, b2_p


@functools.partial(
    jax.jit,
    static_argnames=("inputs_size", "block_rows", "vmem_budget_bytes"))
def wenc_forward(x, w1_p, b1_p, w2_p, b2_p, *, inputs_size, block_rows=1024,
                 vmem_budget_bytes=28 * 1024 * 1024):
    """JAX wrapper mirroring wEnc.forward.

    x    : any shape whose trailing dims flatten to `inputs_size`
           (e.g. [batch, n_gram, embedding_size]); any float dtype
           (bf16 input halves the dominant read stream).
    w1_p/b1_p/w2_p/b2_p : outputs of prepare_params().
    returns: [batch, n_classes] float32
    """
    x2d = x.reshape(-1, inputs_size)            # == x.view(-1, inputs_size)
    batch = x2d.shape[0]
    nf_p = w1_p.shape[1]
    n_classes = w2_p.shape[1]
    x_item = x2d.dtype.itemsize
    w_item = w1_p.dtype.itemsize

    # ---- VMEM budget -> batch-tile size -----------------------------------
    # Resident weight/bias buffers: constant index_map fetches them once, but
    # Pallas still allocates two buffers per input -> count them 2x.
    weight_bytes = 2 * (inputs_size * nf_p * w_item
                        + nf_p * n_classes * w_item
                        + nf_p * 4 + n_classes * 4)
    # Per batch-row cost: double-buffered x / out blocks plus the in-kernel
    # temporaries (x cast, h f32, h compute-dtype copy, f32 accumulator).
    per_row = (2 * inputs_size * x_item
               + 2 * n_classes * 4
               + inputs_size * w_item
               + nf_p * (4 + w_item)
               + n_classes * 4)
    tb_vmem = max(8, (vmem_budget_bytes - weight_bytes) // per_row // 8 * 8)
    # Keep >=2 grid steps for mid-size batches so "parallel" can shard the
    # batch axis across v7x's two TensorCores.
    tb_tc = _round_up(pl.cdiv(batch, 2), 8)
    tb = max(8, min(block_rows, tb_vmem, tb_tc))

    grid = (pl.cdiv(batch, tb),)

    vmem_need = weight_bytes + tb * per_row
    vmem_limit = int(max(vmem_need + (4 << 20), 32 << 20))

    cost = pl.CostEstimate(
        flops=2 * batch * (inputs_size * nf_p + nf_p * n_classes),
        transcendentals=2 * batch * nf_p,        # sigmoid = exp + reciprocal
        bytes_accessed=(batch * inputs_size * x_item      # x (read once)
                        + inputs_size * nf_p * w_item     # W1
                        + nf_p * n_classes * w_item       # W2
                        + (nf_p + n_classes) * 4          # biases
                        + batch * n_classes * 4))         # out (unpadded)

    out = pl.pallas_call(
        _wenc_kernel,
        out_shape=jax.ShapeDtypeStruct((batch, n_classes), jnp.float32),
        grid_spec=pltpu.PrefetchScalarGridSpec(
            num_scalar_prefetch=0,
            grid=grid,
            in_specs=[
                # x: tiled over the batch, double-buffered against compute.
                pl.BlockSpec((tb, inputs_size), lambda i: (i, 0)),
                # Weights / biases: constant index_map -> fetched once.
                pl.BlockSpec((inputs_size, nf_p), lambda i: (0, 0)),
                pl.BlockSpec((1, nf_p), lambda i: (0, 0)),
                pl.BlockSpec((nf_p, n_classes), lambda i: (0, 0)),
                pl.BlockSpec((1, n_classes), lambda i: (0, 0)),
            ],
            # Last block dim == full array dim (n_classes): legal, unpadded.
            out_specs=pl.BlockSpec((tb, n_classes), lambda i: (i, 0)),
        ),
        compiler_params=pltpu.CompilerParams(
            dimension_semantics=("parallel",),
            vmem_limit_bytes=vmem_limit,
        ),
        cost_estimate=cost,
    )(x2d, w1_p, b1_p, w2_p, b2_p)

    return out


def init_params(key, n_classes, n_gram, n_features, embedding_size):
    """Deterministic parameter init matching the wEnc __init__ shapes."""
    inputs_size = n_gram * embedding_size
    k1, k2, k3, k4 = jax.random.split(key, 4)
    # torch.nn.Linear default init: U(-1/sqrt(fan_in), 1/sqrt(fan_in)).
    bound1 = 1.0 / jnp.sqrt(inputs_size)
    bound2 = 1.0 / jnp.sqrt(n_features)
    w1 = jax.random.uniform(k1, (inputs_size, n_features), jnp.float32,
                            -bound1, bound1)
    b1 = jax.random.uniform(k2, (n_features,), jnp.float32, -bound1, bound1)
    w2 = jax.random.uniform(k3, (n_features, n_classes), jnp.float32,
                            -bound2, bound2)
    b2 = jax.random.uniform(k4, (n_classes,), jnp.float32, -bound2, bound2)
    return w1, b1, w2, b2


if __name__ == "__main__":
    # Small shapes consistent with the module's forward.
    batch = 8
    n_gram = 3
    embedding_size = 32
    n_features = 32
    n_classes = 8
    inputs_size = n_gram * embedding_size

    key = jax.random.PRNGKey(0)
    kx, kp = jax.random.split(key)
    x = jax.random.normal(kx, (batch, n_gram, embedding_size), jnp.float32)
    w1, b1, w2, b2 = init_params(kp, n_classes, n_gram, n_features,
                                 embedding_size)

    # Pad/cast weights once, outside the per-call path.
    w1_p, b1_p, w2_p, b2_p = prepare_params(w1, b1, w2, b2,
                                            compute_dtype=jnp.bfloat16)

    out = wenc_forward(x, w1_p, b1_p, w2_p, b2_p, inputs_size=inputs_size)
    out = jax.block_until_ready(out)
    assert out.shape == (batch, n_classes)

    # Pure-JAX reference with the same bf16-in / f32-accumulate math.
    # TODO(synk): bf16 weights diverge from PyTorch's f32 Linear at ~1e-2;
    # use compute_dtype=jnp.float32 in prepare_params for bit-closer parity.
    x2d = x.reshape(-1, inputs_size)
    h_ref = jax.nn.sigmoid(
        jnp.dot(x2d.astype(jnp.bfloat16), w1.astype(jnp.bfloat16),
                preferred_element_type=jnp.float32) + b1)
    ref = jnp.dot(h_ref.astype(jnp.bfloat16), w2.astype(jnp.bfloat16),
                  preferred_element_type=jnp.float32) + b2
    assert jnp.allclose(out, ref, atol=1e-2, rtol=1e-2), (
        float(jnp.max(jnp.abs(out - ref))))

    print("KERNEL_OK")
</pallas_src>

<mosaic_0001>
module attributes {stable_mosaic.version = 11 : i64} {
  func.func @_wenc_kernel(%arg0: i32, %arg1: memref<8x96xf32, #tpu.memory_space<vmem>>, %arg2: memref<96x128xbf16, #tpu.memory_space<vmem>>, %arg3: memref<1x128xf32, #tpu.memory_space<vmem>>, %arg4: memref<128x8xbf16, #tpu.memory_space<vmem>>, %arg5: memref<1x8xf32, #tpu.memory_space<vmem>>, %arg6: memref<8x8xf32, #tpu.memory_space<vmem>>) attributes {dimension_semantics = [#tpu.dimension_semantics<parallel>], iteration_bounds = array<i64: 1>, scalar_prefetch = 0 : i64, scratch_operands = 0 : i64, tpu.core_type = #tpu.core_type<tc>, window_params = [{transform_indices = @transform_0, window_bounds = array<i64: 8, 96>}, {pipeline_mode = #tpu.pipeline_mode<synchronous>, transform_indices = @transform_1, window_bounds = array<i64: 96, 128>}, {pipeline_mode = #tpu.pipeline_mode<synchronous>, transform_indices = @transform_2, window_bounds = array<i64: 1, 128>}, {pipeline_mode = #tpu.pipeline_mode<synchronous>, transform_indices = @transform_3, window_bounds = array<i64: 128, 8>}, {pipeline_mode = #tpu.pipeline_mode<synchronous>, transform_indices = @transform_4, window_bounds = array<i64: 1, 8>}, {transform_indices = @transform_5, window_bounds = array<i64: 8, 8>}]} {
    %c0 = arith.constant 0 : index
    %c0_0 = arith.constant 0 : index
    %0 = vector.load %arg1[%c0, %c0_0] : memref<8x96xf32, #tpu.memory_space<vmem>>, vector<8x96xf32>
    %1 = arith.truncf %0 : vector<8x96xf32> to vector<8x96xbf16>
    %c0_1 = arith.constant 0 : index
    %c0_2 = arith.constant 0 : index
    %2 = vector.load %arg2[%c0_1, %c0_2] : memref<96x128xbf16, #tpu.memory_space<vmem>>, vector<96x128xbf16>
    %cst = arith.constant dense<0.000000e+00> : vector<8x128xf32>
    %3 = tpu.matmul %1, %2, %cst {dimension_numbers = #tpu.dot_dimension_numbers<[1], [0], [0], [1], [0, 0, 1, 1], [], []>} : vector<8x96xbf16>, vector<96x128xbf16>, vector<8x128xf32> -> vector<8x128xf32>
    %c0_3 = arith.constant 0 : index
    %c0_4 = arith.constant 0 : index
    %4 = vector.load %arg3[%c0_3, %c0_4] : memref<1x128xf32, #tpu.memory_space<vmem>>, vector<1x128xf32>
    %5 = vector.broadcast %4 : vector<1x128xf32> to vector<8x128xf32>
    %6 = arith.addf %3, %5 : vector<8x128xf32>
    %7 = arith.negf %6 : vector<8x128xf32>
    %8 = math.exp %7 : vector<8x128xf32>
    %cst_5 = arith.constant 1.000000e+00 : f32
    %9 = vector.broadcast %cst_5 : f32 to vector<8x128xf32>
    %10 = arith.addf %9, %8 : vector<8x128xf32>
    %11 = arith.divf %9, %10 : vector<8x128xf32>
    %12 = arith.truncf %11 : vector<8x128xf32> to vector<8x128xbf16>
    %c0_6 = arith.constant 0 : index
    %c0_7 = arith.constant 0 : index
    %13 = vector.load %arg4[%c0_6, %c0_7] : memref<128x8xbf16, #tpu.memory_space<vmem>>, vector<128x8xbf16>
    %cst_8 = arith.constant dense<0.000000e+00> : vector<8x8xf32>
    %14 = tpu.matmul %12, %13, %cst_8 {dimension_numbers = #tpu.dot_dimension_numbers<[1], [0], [0], [1], [0, 0, 1, 1], [], []>} : vector<8x128xbf16>, vector<128x8xbf16>, vector<8x8xf32> -> vector<8x8xf32>
    %c0_9 = arith.constant 0 : index
    %c0_10 = arith.constant 0 : index
    %15 = vector.load %arg5[%c0_9, %c0_10] : memref<1x8xf32, #tpu.memory_space<vmem>>, vector<1x8xf32>
    %16 = vector.broadcast %15 : vector<1x8xf32> to vector<8x8xf32>
    %17 = arith.addf %14, %16 : vector<8x8xf32>
    %c0_11 = arith.constant 0 : index
    %c0_12 = arith.constant 0 : index
    %18 = vector.load %arg6[%c0_11, %c0_12] : memref<8x8xf32, #tpu.memory_space<vmem>>, vector<8x8xf32>
    tpu.vector_store %arg6[%c0_11, %c0_12], %17 {strides = array<i32>} : memref<8x8xf32, #tpu.memory_space<vmem>>, vector<8x8xf32>,
    return
  }
  func.func @transform_0(%arg0: i32) -> (i32, i32) {
    %c0_i32 = arith.constant 0 : i32
    %c0_i32_0 = arith.constant 0 : i32
    return %arg0, %c0_i32 : i32, i32
  }
  func.func @transform_1(%arg0: i32) -> (i32, i32) {
    %c0_i32 = arith.constant 0 : i32
    %c0_i32_0 = arith.constant 0 : i32
    %c0_i32_1 = arith.constant 0 : i32
    return %c0_i32, %c0_i32_0 : i32, i32
  }
  func.func @transform_2(%arg0: i32) -> (i32, i32) {
    %c0_i32 = arith.constant 0 : i32
    %c0_i32_0 = arith.constant 0 : i32
    %c0_i32_1 = arith.constant 0 : i32
    return %c0_i32, %c0_i32_0 : i32, i32
  }
  func.func @transform_3(%arg0: i32) -> (i32, i32) {
    %c0_i32 = arith.constant 0 : i32
    %c0_i32_0 = arith.constant 0 : i32
    %c0_i32_1 = arith.constant 0 : i32
    return %c0_i32, %c0_i32_0 : i32, i32
  }
  func.func @transform_4(%arg0: i32) -> (i32, i32) {
    %c0_i32 = arith.constant 0 : i32
    %c0_i32_0 = arith.constant 0 : i32
    %c0_i32_1 = arith.constant 0 : i32
    return %c0_i32, %c0_i32_0 : i32, i32
  }
  func.func @transform_5(%arg0: i32) -> (i32, i32) {
    %c0_i32 = arith.constant 0 : i32
    %c0_i32_0 = arith.constant 0 : i32
    return %arg0, %c0_i32 : i32, i32
  }
}

</mosaic_0001>

<llo_original>
// kernel: wenc_forward.1
$region0: #{wenc_forward.1}
  #allocation0 [shape = 'u32[]', space=smem, size = 0x4, offset = 0x4, fixed_abs, tag = 'smem constant byte address 0x4 - core index']
  #allocation1 [shape = 'u32[72,128]{1,0:T(1,128)}', space=vmem, size = 0x9000, scoped, tag = 'internal scratch']
  %s0 = inlined_call_operand.vmem [shape: f32[8,96], index: 0, kind: input, shape index: {}]
  %s1 = inlined_call_operand.vmem [shape: bf16[96,128], index: 1, kind: input, shape index: {}]
  %s2 = inlined_call_operand.vmem [shape: f32[1,128], index: 2, kind: input, shape index: {}]
  %s3 = inlined_call_operand.vmem [shape: bf16[128,8], index: 3, kind: input, shape index: {}]
  %s4 = inlined_call_operand.vmem [shape: f32[1,8], index: 4, kind: input, shape index: {}]
  %s5 = inlined_call_operand.hbm [shape: f32[8,8], index: 5, kind: output, shape index: {}]
  %s6 = sld [smem:[#allocation0]]
  $region30: #{wenc_forward.1} parent=0
    _
  %s8 = ssub.s32 1, %s6
  %s9 = scalar_select 0, %s8, %s6
  $region1: #{wenc_forward.1} parent=0
    #allocation2 [shape = 'u8[4096]{0}', space=vmem, size = 0x1000, scoped, tag = 'output window, operand 0, single buffered']
    #allocation3 [shape = 's32[1]{0}', space=sflag, size = 0x4, scoped, tag = 'scoped memory for wenc_forward.1']
    %10 = vsyncpa [#allocation3], 0
    // Predicated region
    $region2: #{wenc_forward.1} parent=1 // pred_check
      _
    $region3: #{wenc_forward.1} parent=1 // pred_check_branch
      %12 = sbr.rel (0) target = $region5
    $region4: #{wenc_forward.1} parent=1 // pred_region
      _
    $region5: #{wenc_forward.1} parent=1 // pred_fallthru
      _
    // Predicated region
    $region6: #{wenc_forward.1} parent=1 // pred_check
      _
    $region7: #{wenc_forward.1} parent=1 // pred_check_branch
      %14 = sbr.rel (0) target = $region9
    $region8: #{wenc_forward.1} parent=1 // pred_region
      _
    $region9: #{wenc_forward.1} parent=1 // pred_fallthru
      _
    // Predicated region
    $region10: #{wenc_forward.1} parent=1 // pred_check
      _
    $region11: #{wenc_forward.1} parent=1 // pred_check_branch
      %16 = sbr.rel (0) target = $region13
    $region12: #{wenc_forward.1} parent=1 // pred_region
      _
    $region13: #{wenc_forward.1} parent=1 // pred_fallthru
      _
    // Predicated region
    $region14: #{wenc_forward.1} parent=1 // pred_check
      _
    $region15: #{wenc_forward.1} parent=1 // pred_check_branch
      %18 = sbr.rel (0) target = $region17
    $region16: #{wenc_forward.1} parent=1 // pred_region
      _
    $region17: #{wenc_forward.1} parent=1 // pred_fallthru
      _
    // Predicated region
    $region18: #{wenc_forward.1} parent=1 // pred_check
      _
    $region19: #{wenc_forward.1} parent=1 // pred_check_branch
      %20 = sbr.rel (0) target = $region21
    $region20: #{wenc_forward.1} parent=1 // pred_region
      _
    $region21: #{wenc_forward.1} parent=1 // pred_fallthru
      _
    %v22 = vld [vmem:[%s0] sm:$0xff]
    %v23 = vpack.c.bf16 %v22, %v22
    %v24 = vld [vmem:[%s1] sm:$0xf]
    %v25 = vld [vmem:[%s1 + $0x4] sm:$0xf]
    %v26 = vld [vmem:[%s1 + $0x8] sm:$0xf]
    %v27 = vld [vmem:[%s1 + $0xc] sm:$0xf]
    %v28 = vld [vmem:[%s1 + $0x10] sm:$0xf]
    %v29 = vld [vmem:[%s1 + $0x14] sm:$0xf]
    %v30 = vld [vmem:[%s1 + $0x18] sm:$0xf]
    %v31 = vld [vmem:[%s1 + $0x1c] sm:$0xf]
    %v32 = vld [vmem:[%s1 + $0x20] sm:$0xf]
    %v33 = vld [vmem:[%s1 + $0x24] sm:$0xf]
    %v34 = vld [vmem:[%s1 + $0x28] sm:$0xf]
    %v35 = vld [vmem:[%s1 + $0x2c] sm:$0xf]
    %v36 = vld [vmem:[%s2] sm:$0x1]
    %v38 = vperm.slane %v36, 0
    %v52 = vunpack.c.l.b16 %v24
    %v53 = vunpack.c.l.b16 %v25
    %v54 = vunpack.c.l.b16 %v26
    %v55 = vunpack.c.l.b16 %v27
    %v56 = vunpack.c.l.b16 %v28
    %v57 = vunpack.c.l.b16 %v29
    %v58 = vunpack.c.l.b16 %v30
    %v59 = vunpack.c.l.b16 %v31
    %v60 = vunpack.c.l.b16 %v32
    %v61 = vunpack.c.l.b16 %v33
    %v62 = vunpack.c.l.b16 %v34
    %v63 = vunpack.c.l.b16 %v35
    %v64 = vpack.c.b16 %v53, %v52
    %v65 = vpack.c.b16 %v55, %v54
    %v66 = vpack.c.b16 %v57, %v56
    %v67 = vpack.c.b16 %v59, %v58
    %v68 = vpack.c.b16 %v61, %v60
    %v69 = vpack.c.b16 %v63, %v62
    %vm76 = vcmask 785408
    %v78 = vsel %vm76, %v23, 0
    %80 = vmatpush.bf16.msra.mxu0 0
    %81 = vmatpush.bf16.msra.mxu0 0
    %82 = vmatpush.bf16.msra.mxu0 %v69
    %83 = vmatpush.bf16.msra.mxu0 %v68
    %84 = vmatpush.bf16.msra.mxu0 %v67
    %85 = vmatpush.bf16.msra.mxu0 %v66
    %86 = vmatpush.bf16.msra.mxu0 %v65
    %87 = vmatpush.bf16.msra.mxu0 %v64
    %88 = vmatmul.bf16.gmra.mxu0 %v78
    %v89 = vpop.f32.mrf.mxu0
    %v90 = vadd.f32 %v38, %v89
    %v91 = vpop.f32.mrf.mxu0
    %92 = vdwg.mxu0
    %v93 = vxor.u32 %v90, 2147483648
    %v94 = vmul.f32 %v93, 1.442695
    %v95 = vpow.pop %v94
    %v96 = vadd.f32 %v95, 1.0
    %v97 = vrcp.pop %v96
    %v98 = vmul.f32 %v96, %v97
    %v99 = vsub.f32 1.0, %v98
    %v100 = vmul.f32 %v97, %v99
    %v101 = vadd.f32 %v97, %v100
    %vm102 = vweird.f32 %v96
    %vm103 = vweird.f32 %v97
    %vm104 = vmor %vm102, %vm103
    %v105 = vsel %vm104, %v97, %v101
    %v106 = vand.u32 2147483647, %v96
    %vm107 = vcmp.eq.f32.partialorder %v106, 8.507059e+37
    %v108 = vand.u32 %v96, 2147483648
    %v109 = vor.u32 1.1754944e-38, %v108
    %v110 = vsel %vm107, %v109, %v105
    %v111 = vmul.f32 1.0, %v110
    %v112 = vpack.c.bf16 %v111, %v111
    %v113 = vld [vmem:[%s3] sm:$0xf]
    %v114 = vld [vmem:[%s3 + $0x4] sm:$0xf]
    %v115 = vld [vmem:[%s3 + $0x8] sm:$0xf]
    %v116 = vld [vmem:[%s3 + $0xc] sm:$0xf]
    %v117 = vld [vmem:[%s3 + $0x10] sm:$0xf]
    %v118 = vld [vmem:[%s3 + $0x14] sm:$0xf]
    %v119 = vld [vmem:[%s3 + $0x18] sm:$0xf]
    %v120 = vld [vmem:[%s3 + $0x1c] sm:$0xf]
    %v121 = vld [vmem:[%s3 + $0x20] sm:$0xf]
    %v122 = vld [vmem:[%s3 + $0x24] sm:$0xf]
    %v123 = vld [vmem:[%s3 + $0x28] sm:$0xf]
    %v124 = vld [vmem:[%s3 + $0x2c] sm:$0xf]
    %v125 = vld [vmem:[%s3 + $0x30] sm:$0xf]
    %v126 = vld [vmem:[%s3 + $0x34] sm:$0xf]
    %v127 = vld [vmem:[%s3 + $0x38] sm:$0xf]
    %v128 = vld [vmem:[%s3 + $0x3c] sm:$0xf]
    %v129 = vld [vmem:[%s4] sm:$0x1]
    %v131 = vperm.slane %v129, 0
    %v149 = vunpack.c.l.b16 %v113
    %v150 = vunpack.c.l.b16 %v114
    %v151 = vunpack.c.l.b16 %v115
    %v152 = vunpack.c.l.b16 %v116
    %v153 = vunpack.c.l.b16 %v117
    %v154 = vunpack.c.l.b16 %v118
    %v155 = vunpack.c.l.b16 %v119
    %v156 = vunpack.c.l.b16 %v120
    %v157 = vunpack.c.l.b16 %v121
    %v158 = vunpack.c.l.b16 %v122
    %v159 = vunpack.c.l.b16 %v123
    %v160 = vunpack.c.l.b16 %v124
    %v161 = vunpack.c.l.b16 %v125
    %v162 = vunpack.c.l.b16 %v126
    %v163 = vunpack.c.l.b16 %v127
    %v164 = vunpack.c.l.b16 %v128
    %v165 = vpack.c.b16 %v150, %v149
    %v166 = vpack.c.b16 %v152, %v151
    %v167 = vpack.c.b16 %v154, %v153
    %v168 = vpack.c.b16 %v156, %v155
    %v169 = vpack.c.b16 %v158, %v157
    %v170 = vpack.c.b16 %v160, %v159
    %v171 = vpack.c.b16 %v162, %v161
    %v172 = vpack.c.b16 %v164, %v163
    %181 = vmatpush.bf16.msra.mxu0 %v172
    %182 = vmatpush.bf16.msra.mxu0 %v171
    %183 = vmatpush.bf16.msra.mxu0 %v170
    %184 = vmatpush.bf16.msra.mxu0 %v169
    %185 = vmatpush.bf16.msra.mxu0 %v168
    %186 = vmatpush.bf16.msra.mxu0 %v167
    %187 = vmatpush.bf16.msra.mxu0 %v166
    %188 = vmatpush.bf16.msra.mxu0 %v165
    %189 = vmatmul.bf16.gmra.mxu0 %v112
    %v190 = vpop.f32.mrf.mxu0
    %v191 = vadd.f32 %v131, %v190
    %v192 = vpop.f32.mrf.mxu0
    %193 = vdwg.mxu0
    %vm194 = vcmask 64512
    %195 = vst.msk [vmem:[#allocation2] sm:$0xff] %vm194, %v191
    // Predicated region
    $region22: #{wenc_forward.1} parent=1 // pred_check
      _
    $region23: #{wenc_forward.1} parent=1 // pred_check_branch
      %197 = sbr.rel (0) target = $region25
    $region24: #{wenc_forward.1} parent=1 // pred_region
      %199 = vsyncadd [#allocation3], 0
      %s201 = sshll.u32 [#allocation2], 4
      %s202 = int_to_ptr.vmem [resolvable:$true] %s201
      %s203 = sshll.u32 %s5, 4
      %s204 = int_to_ptr.hbm [resolvable:$true] %s203
      %206 = dma.vmem_to_hbm [thread:$0]  %s202, 128, %s204, [#allocation3]
    $region25: #{wenc_forward.1} parent=1 // pred_fallthru
      _
    // Predicated region
    $region26: #{wenc_forward.1} parent=1 // pred_check
      _
    $region27: #{wenc_forward.1} parent=1 // pred_check_branch
      %208 = sbr.rel (0) target = $region29
    $region28: #{wenc_forward.1} parent=1 // pred_region
      %210 = dma.done [#allocation3], 128
    $region29: #{wenc_forward.1} parent=1 // pred_fallthru
      _
    %211 = vsyncpa [#allocation3], 1

</llo_original>
